<compile_context>
chip_gen: v5e
topology: v5e:2x2
jax: 0.10.0
libtpu: 0.0.40
codegen_flags: <defaults>
</compile_context>

<pallas_src>
import math

import jax
import jax.numpy as jnp
from jax.experimental import pallas as pl
from jax.experimental.pallas import tpu as pltpu


_TARGET_STEP_BYTES = 8 * 1024 * 1024    # x bytes per grid step (x+out ~2x this per step)
_VMEM_LIVE_BUDGET = 40 * 1024 * 1024    # live double-buffered blocks: 2*x + 2*out + 2*pe
_VMEM_LIMIT_BYTES = 48 * 1024 * 1024    # explicit scoped-VMEM limit (safe on v5e/v6e/v7x)
_TINY_X_BYTES = 128 * 1024              # below this, plain XLA add beats launch overhead


def _build_pe_table(max_len: int, dim: int, dtype=jnp.float32) -> jnp.ndarray:
    """Deterministic sinusoidal PE buffer, shape (max_len, dim). Handles odd dim."""
    position = jnp.arange(0, max_len, dtype=jnp.float32)[:, None]            # (max_len, 1)
    div_term = jnp.exp(
        jnp.arange(0, dim, 2, dtype=jnp.float32) * -(math.log(10000.0) / dim)
    )                                                                        # (ceil(dim/2),)
    angles = position * div_term                                             # (max_len, ceil(dim/2))
    pe = jnp.zeros((max_len, dim), dtype=jnp.float32)
    pe = pe.at[:, 0::2].set(jnp.sin(angles))
    pe = pe.at[:, 1::2].set(jnp.cos(angles[:, : dim // 2]))
    return pe.astype(dtype)


def _pe_add_kernel(x_ref, pe_ref, o_ref):
    # Tiled path:     x_ref (b_blk, ts, D) + pe_ref (ts, D)  -> broadcast over batch.
    # Flattened path: x_ref (B, tn)        + pe_ref (1, tn)  -> broadcast over sublanes.
    # Pure VPU add; cast is a no-op when dtypes already match.
    o_ref[...] = (x_ref[...] + pe_ref[...]).astype(o_ref.dtype)


def _round_down(x: int, m: int) -> int:
    return (x // m) * m


def _round_up(x: int, m: int) -> int:
    return ((x + m - 1) // m) * m


def positional_encoding_forward(
    input_emb: jnp.ndarray, pe_table: jnp.ndarray, *, donate_input: bool = False
) -> jnp.ndarray:
    """input_emb: (B, S, D); pe_table: (max_len, D).  Returns input_emb + pe[:S]."""
    B, S, D = input_emb.shape
    dtype = input_emb.dtype
    itemsize = jnp.dtype(dtype).itemsize
    sublane = max(8, 32 // itemsize)          # native sublane tile: 8 f32 / 16 bf16 / 32 int8

    # Slice to exactly S rows and cast to the activation dtype ONCE in the wrapper:
    # matches x's seq tiling exactly (no OOB pe reads) and halves pe DMA bytes for bf16.
    pe_rows = pe_table[:S].astype(dtype)      # (S, D)

    x_bytes = B * S * D * itemsize
    if x_bytes < _TINY_X_BYTES:
        # Fixed pallas_call launch overhead dominates tiny adds; plain XLA wins here.
        return input_emb + pe_rows[None]

    io_alias = {0: 0} if donate_input else {}

    if D % 128 == 0:
        # Lane-dense already: D on lanes, batch folded into the block, seq axis tiled.
        row_bytes = D * itemsize

        # Fold as much batch as the live-VMEM budget allows at the minimum tile height.
        b_blk = B
        while b_blk > 1 and (4 * b_blk + 2) * sublane * row_bytes > _VMEM_LIVE_BUDGET:
            b_blk = (b_blk + 1) // 2

        # Sequence-tile height: hit the per-step traffic target, stay under the budget.
        ts_budget = max(sublane, _VMEM_LIVE_BUDGET // ((4 * b_blk + 2) * row_bytes))
        ts_target = max(sublane, _TARGET_STEP_BYTES // (b_blk * row_bytes))
        ts = min(S, ts_target, ts_budget)
        if ts < S:
            ts = max(sublane, _round_down(ts, sublane))
        # Keep >= 2 grid steps when possible so both v7x TensorCores get work.
        if pl.cdiv(S, ts) * pl.cdiv(B, b_blk) == 1 and S > sublane:
            ts = _round_up(pl.cdiv(S, 2), sublane)

        num_s = pl.cdiv(S, ts)
        num_b = pl.cdiv(B, b_blk)

        return pl.pallas_call(
            _pe_add_kernel,
            out_shape=jax.ShapeDtypeStruct((B, S, D), dtype),
            grid=(num_s, num_b),                       # batch innermost -> pe block resident
            in_specs=[
                pl.BlockSpec((b_blk, ts, D), lambda s, b: (b, s, 0)),
                pl.BlockSpec((ts, D), lambda s, b: (s, 0)),
            ],
            out_specs=pl.BlockSpec((b_blk, ts, D), lambda s, b: (b, s, 0)),
            compiler_params=pltpu.CompilerParams(
                dimension_semantics=("parallel", "parallel"),
                vmem_limit_bytes=_VMEM_LIMIT_BYTES,
            ),
            input_output_aliases=io_alias,
        )(input_emb, pe_rows)

    # D not lane-aligned (e.g. D < 128): flatten (S, D) onto lanes so HBM stores are
    # lane-dense unmasked vst instead of masked partial stores.
    N = S * D
    x2 = input_emb.reshape(B, N)              # contiguous trailing-dim collapse: no copy
    pe_flat = pe_rows.reshape(1, N)           # one small row; traffic << B*S*D

    tn_budget = max(128, _VMEM_LIVE_BUDGET // ((4 * B + 2) * itemsize))
    tn_target = max(128, _TARGET_STEP_BYTES // (B * itemsize))
    tn = min(N, tn_target, tn_budget)
    if tn < N:
        tn = max(128, _round_down(tn, 128))
    # Keep >= 2 parallel grid steps when possible (v7x dual TensorCore).
    if pl.cdiv(N, tn) == 1 and N > 128:
        tn = _round_up(pl.cdiv(N, 2), 128)
    num_n = pl.cdiv(N, tn)

    out2 = pl.pallas_call(
        _pe_add_kernel,
        out_shape=jax.ShapeDtypeStruct((B, N), dtype),
        grid=(num_n,),
        in_specs=[
            pl.BlockSpec((B, tn), lambda n: (0, n)),
            pl.BlockSpec((1, tn), lambda n: (0, n)),
        ],
        out_specs=pl.BlockSpec((B, tn), lambda n: (0, n)),
        compiler_params=pltpu.CompilerParams(
            dimension_semantics=("parallel",),
            vmem_limit_bytes=_VMEM_LIMIT_BYTES,
        ),
        input_output_aliases=io_alias,
    )(x2, pe_flat)
    return out2.reshape(B, S, D)


if __name__ == "__main__":
    MAX_LEN = 5000
    key = jax.random.PRNGKey(0)
    k0, k1, k2, k3 = jax.random.split(key, 4)

    # Case 1: module's demo-scale shape (tiny) -> plain-XLA fallback path.
    B, S, D = 2, 8, 32
    pe32 = _build_pe_table(MAX_LEN, D)
    x = jax.random.normal(k0, (B, S, D), dtype=jnp.float32)
    out = jax.block_until_ready(positional_encoding_forward(x, pe32))
    ref = x + pe32[None, :S, :]
    assert out.shape == (B, S, D)
    assert jnp.allclose(out, ref, atol=1e-6, rtol=1e-6), "mismatch (tiny fallback path)"

    # Case 2: lane-aligned D, f32 -> batch-folded, seq-tiled Pallas path (>=2 grid steps).
    B2, S2, D2 = 2, 256, 128
    pe128 = _build_pe_table(MAX_LEN, D2)
    x2 = jax.random.normal(k1, (B2, S2, D2), dtype=jnp.float32)
    out2 = jax.block_until_ready(positional_encoding_forward(x2, pe128))
    ref2 = x2 + pe128[None, :S2, :]
    assert out2.shape == (B2, S2, D2)
    assert jnp.allclose(out2, ref2, atol=1e-6, rtol=1e-6), "mismatch (tiled f32 path)"

    # Case 3: bf16 activations + f32 table -> pe cast once in wrapper, bf16 add in kernel.
    x3 = jax.random.normal(k2, (B2, S2, D2), dtype=jnp.bfloat16)
    out3 = jax.block_until_ready(positional_encoding_forward(x3, pe128))
    ref3 = x3 + pe128[:S2].astype(jnp.bfloat16)[None]
    assert out3.shape == (B2, S2, D2)
    assert out3.dtype == jnp.bfloat16
    assert jnp.allclose(out3.astype(jnp.float32), ref3.astype(jnp.float32),
                        atol=1e-2, rtol=1e-2), "mismatch (tiled bf16 path)"

    # Case 4: D < 128, large enough B*S -> lane-flattened Pallas path.
    B4, S4, D4 = 8, 512, 64
    pe64 = _build_pe_table(MAX_LEN, D4)
    x4 = jax.random.normal(k3, (B4, S4, D4), dtype=jnp.float32)
    out4 = jax.block_until_ready(positional_encoding_forward(x4, pe64))
    ref4 = x4 + pe64[None, :S4, :]
    assert out4.shape == (B4, S4, D4)
    assert jnp.allclose(out4, ref4, atol=1e-6, rtol=1e-6), "mismatch (flattened path)"

    print("KERNEL_OK")
</pallas_src>

<mosaic_0001>
module attributes {stable_mosaic.version = 11 : i64} {
  func.func @_pe_add_kernel(%arg0: i32, %arg1: i32, %arg2: memref<2x128x128xf32, #tpu.memory_space<vmem>>, %arg3: memref<128x128xf32, #tpu.memory_space<vmem>>, %arg4: memref<2x128x128xf32, #tpu.memory_space<vmem>>) attributes {dimension_semantics = [#tpu.dimension_semantics<parallel>, #tpu.dimension_semantics<parallel>], iteration_bounds = array<i64: 2, 1>, scalar_prefetch = 0 : i64, scratch_operands = 0 : i64, tpu.core_type = #tpu.core_type<tc>, window_params = [{transform_indices = @transform_0, window_bounds = array<i64: 2, 128, 128>}, {transform_indices = @transform_1, window_bounds = array<i64: 128, 128>}, {transform_indices = @transform_2, window_bounds = array<i64: 2, 128, 128>}]} {
    %c0 = arith.constant 0 : index
    %c0_0 = arith.constant 0 : index
    %c0_1 = arith.constant 0 : index
    %0 = vector.load %arg2[%c0, %c0_0, %c0_1] : memref<2x128x128xf32, #tpu.memory_space<vmem>>, vector<2x128x128xf32>
    %c0_2 = arith.constant 0 : index
    %c0_3 = arith.constant 0 : index
    %1 = vector.load %arg3[%c0_2, %c0_3] : memref<128x128xf32, #tpu.memory_space<vmem>>, vector<128x128xf32>
    %2 = vector.shape_cast %1 : vector<128x128xf32> to vector<1x128x128xf32>
    %3 = vector.broadcast %2 : vector<1x128x128xf32> to vector<2x128x128xf32>
    %4 = arith.addf %0, %3 : vector<2x128x128xf32>
    %c0_4 = arith.constant 0 : index
    %c0_5 = arith.constant 0 : index
    %c0_6 = arith.constant 0 : index
    %5 = vector.load %arg4[%c0_4, %c0_5, %c0_6] : memref<2x128x128xf32, #tpu.memory_space<vmem>>, vector<2x128x128xf32>
    tpu.vector_store %arg4[%c0_4, %c0_5, %c0_6], %4 {strides = array<i32>} : memref<2x128x128xf32, #tpu.memory_space<vmem>>, vector<2x128x128xf32>,
    return
  }
  func.func @transform_0(%arg0: i32, %arg1: i32) -> (i32, i32, i32) {
    %c0_i32 = arith.constant 0 : i32
    %c0_i32_0 = arith.constant 0 : i32
    return %arg1, %arg0, %c0_i32 : i32, i32, i32
  }
  func.func @transform_1(%arg0: i32, %arg1: i32) -> (i32, i32) {
    %c0_i32 = arith.constant 0 : i32
    %c0_i32_0 = arith.constant 0 : i32
    return %arg0, %c0_i32 : i32, i32
  }
  func.func @transform_2(%arg0: i32, %arg1: i32) -> (i32, i32, i32) {
    %c0_i32 = arith.constant 0 : i32
    %c0_i32_0 = arith.constant 0 : i32
    return %arg1, %arg0, %c0_i32 : i32, i32, i32
  }
}

</mosaic_0001>

<llo_original>
// kernel: tpu_custom_call.1
$region0: #{tpu_custom_call.1}
  #allocation0 [shape = 'u32[]', space=smem, size = 0x4, offset = 0x4, fixed_abs, tag = 'smem constant byte address 0x4 - core index']
  #allocation1 [shape = 'u32[72,128]{1,0:T(1,128)}', space=vmem, size = 0x9000, scoped, tag = 'internal scratch']
  #allocation8 [shape = 's32[]', space=sflag, size = 0x4, offset = 0, fixed_abs, tag = 'sflag constant byte address 0x0 - dummy sync flag']
  #allocation10 [shape = 's32[]', space=sflag, size = 0x4, offset = 0, fixed_abs, tag = 'sflag constant byte address 0x0 - dummy sync flag']
  %s0 = inlined_call_operand.hbm [shape: f32[2,256,128], index: 0, kind: input, shape index: {}]
  %s1 = inlined_call_operand.hbm [shape: f32[256,128], index: 1, kind: input, shape index: {}]
  %s2 = inlined_call_operand.hbm [shape: f32[2,256,128], index: 2, kind: output, shape index: {}]
  %s3 = sld [smem:[#allocation0]]
  $region49: #{tpu_custom_call.1} parent=0
    _
  %s5 = ssub.s32 1, %s3
  %s6 = scalar_select 0, %s5, %s3
  $region1: #{tpu_custom_call.1} parent=0
    #allocation2 [shape = 'u8[262144]{0}', space=vmem, size = 0x40000, scoped, tag = 'input window, operand 0']
    #allocation3 [shape = 's32[2]{0}', space=sflag, size = 0x8, scoped, tag = 'scoped memory for tpu_custom_call.1']
    #allocation4 [shape = 's32[2]{0}', space=sflag, size = 0x8, scoped, tag = 'scoped memory for tpu_custom_call.1']
    #allocation5 [shape = 'u8[131072]{0}', space=vmem, size = 0x20000, scoped, tag = 'input window, operand 1']
    #allocation6 [shape = 's32[2]{0}', space=sflag, size = 0x8, scoped, tag = 'scoped memory for tpu_custom_call.1']
    #allocation7 [shape = 'u8[262144]{0}', space=vmem, size = 0x40000, scoped, tag = 'output window, operand 0']
    %7 = vsyncpa [#allocation3], 0
    %s8 = scalar_lea.sflag [#allocation3], 1
    %9 = vsyncpa %s8, 0
    %10 = vsyncpa [#allocation6], 0
    %s11 = scalar_lea.sflag [#allocation6], 1
    %12 = vsyncpa %s11, 0
    %13 = vsyncpa [#allocation4], 0
    %s14 = scalar_lea.sflag [#allocation4], 1
    %15 = vsyncpa %s14, 0
    loop: start=0, step=1, limit=4
    $region2: #{tpu_custom_call.1} parent=1 // loop_pre_header
      _
    $region3: #{tpu_custom_call.1} parent=1 // loop_header
      %s17 = sphi 0, %s21
      %p18 = scmp.ge.s32.totalorder %s17, 4
      %s24 = sphi 0, %s36
      %s25 = sphi 0, %s32
      %s26 = sphi 0, %s24
      %s27 = sphi 0, %s25
      %s28 = sphi 0, %s26
      %s29 = sphi 0, %s27
      %s41 = sphi 0, %s43
      %s44 = sphi 0, %s41
      %s45 = sphi 0, %s44
      %s61 = sphi 0, %s45
      %s67 = sphi 0, %s69
      %s70 = sphi 0, %s67
      %s71 = sphi 0, %s70
      %s87 = sphi 0, %s71
      %s95 = sphi 0, %s97
      %s98 = sphi 0, %s95
      %s99 = sphi 0, %s98
      %s115 = sphi 0, %s99
    $region4: #{tpu_custom_call.1} parent=1 // loop_header_branch
      %20 = sbr.rel (%p18) target = $region8
    $region5: #{tpu_custom_call.1} parent=1 // loop_body
      %s22 = ssub.s32 %s17, 1
      %s23 = ssub.s32 %s17, 2
      %s30 = sadd.s32 1, %s25
      %p31 = scmp.ge.s32.totalorder %s30, 1
      %s32 = scalar_select %p31, 0, %s30
      %s33 = sadd.s32 1, %s24
      %s34 = scalar_select %p31, %s33, %s24
      %p35 = scmp.ge.s32.totalorder %s34, 2
      %s36 = scalar_select %p35, 0, %s34
      %s37 = ssub.s32 %s25, %s32
      %s38 = ssub.s32 %s24, %s36
      %s39 = sor.u32 %s37, %s38
      %p40 = scmp.eq.s32.totalorder %s39, 0
      %s42 = sadd.s32 %s41, 1
      %s43 = scalar_select %p40, %s41, %s42
      %p46 = pneg %p40
      %p47 = scmp.eq.s32.totalorder %s17, 1
      %p48 = por %p46, %p47
      %p49 = scmp.ne.s32.totalorder %s41, %s44
      %p50 = scmp.eq.s32.totalorder %s17, 0
      %p51 = por %p49, %p50
      %p52 = scmp.ne.s32.totalorder %s41, %s44
      %p53 = scmp.eq.s32.totalorder %s22, 1
      %p54 = por %p52, %p53
      %p55 = scmp.ne.s32.totalorder %s44, %s45
      %p56 = scmp.eq.s32.totalorder %s22, 0
      %p57 = por %p55, %p56
      %p58 = scmp.ne.s32.totalorder %s44, %s45
      %p59 = scmp.eq.s32.totalorder %s23, 1
      %p60 = por %p58, %p59
      %p62 = scmp.ne.s32.totalorder %s45, %s61
      %p63 = scmp.eq.s32.totalorder %s23, 0
      %p64 = por %p62, %p63
      %s65 = ssub.s32 %s24, %s36
      %p66 = scmp.eq.s32.totalorder %s65, 0
      %s68 = sadd.s32 %s67, 1
      %s69 = scalar_select %p66, %s67, %s68
      %p72 = pneg %p66
      %p73 = scmp.eq.s32.totalorder %s17, 1
      %p74 = por %p72, %p73
      %p75 = scmp.ne.s32.totalorder %s67, %s70
      %p76 = scmp.eq.s32.totalorder %s17, 0
      %p77 = por %p75, %p76
      %p78 = scmp.ne.s32.totalorder %s67, %s70
      %p79 = scmp.eq.s32.totalorder %s22, 1
      %p80 = por %p78, %p79
      %p81 = scmp.ne.s32.totalorder %s70, %s71
      %p82 = scmp.eq.s32.totalorder %s22, 0
      %p83 = por %p81, %p82
      %p84 = scmp.ne.s32.totalorder %s70, %s71
      %p85 = scmp.eq.s32.totalorder %s23, 1
      %p86 = por %p84, %p85
      %p88 = scmp.ne.s32.totalorder %s71, %s87
      %p89 = scmp.eq.s32.totalorder %s23, 0
      %p90 = por %p88, %p89
      %s91 = ssub.s32 %s25, %s32
      %s92 = ssub.s32 %s24, %s36
      %s93 = sor.u32 %s91, %s92
      %p94 = scmp.eq.s32.totalorder %s93, 0
      %s96 = sadd.s32 %s95, 1
      %s97 = scalar_select %p94, %s95, %s96
      %p100 = pneg %p94
      %p101 = scmp.eq.s32.totalorder %s17, 1
      %p102 = por %p100, %p101
      %p103 = scmp.ne.s32.totalorder %s95, %s98
      %p104 = scmp.eq.s32.totalorder %s17, 0
      %p105 = por %p103, %p104
      %p106 = scmp.ne.s32.totalorder %s95, %s98
      %p107 = scmp.eq.s32.totalorder %s22, 1
      %p108 = por %p106, %p107
      %p109 = scmp.ne.s32.totalorder %s98, %s99
      %p110 = scmp.eq.s32.totalorder %s22, 0
      %p111 = por %p109, %p110
      %p112 = scmp.ne.s32.totalorder %s98, %s99
      %p113 = scmp.eq.s32.totalorder %s23, 1
      %p114 = por %p112, %p113
      %p116 = scmp.ne.s32.totalorder %s99, %s115
      %p117 = scmp.eq.s32.totalorder %s23, 0
      %p118 = por %p116, %p117
      %p119 = scmp.le.s32.totalorder 1, %s17
      %p120 = scmp.lt.s32.totalorder %s17, 3
      %p121 = pnand %p119, %p120
      %p122 = pneg %p121
      // Predicated region
      $region9: #{tpu_custom_call.1} parent=5 // pred_check
        _
      $region10: #{tpu_custom_call.1} parent=5 // pred_check_branch
        %124 = sbr.rel (%p121) target = $region12
      $region11: #{tpu_custom_call.1} parent=5 // pred_region
        %s125 = ssub.s32 %s17, 1
      $region12: #{tpu_custom_call.1} parent=5 // pred_fallthru
        _
      %p126 = scmp.lt.s32.totalorder %s17, 2
      // Predicated region
      $region13: #{tpu_custom_call.1} parent=5 // pred_check
        %p127 = pneg %p126
      $region14: #{tpu_custom_call.1} parent=5 // pred_check_branch
        %129 = sbr.rel (%p127) target = $region16
      $region15: #{tpu_custom_call.1} parent=5 // pred_region
        // Predicated region
        $region17: #{tpu_custom_call.1} parent=15 // pred_check
          %p130 = pneg %p51
        $region18: #{tpu_custom_call.1} parent=15 // pred_check_branch
          %132 = sbr.rel (%p130) target = $region20
        $region19: #{tpu_custom_call.1} parent=15 // pred_region
          #allocation9 [shape = 'u32[6]{0}', space=smem, size = 0x18, scoped, tag = 'DMA stride descriptor']
          %s133 = sand.u32 %s41, 1
          %s134 = scalar_lea.sflag [#allocation3], %s133
          %s135 = sand.u32 %s41, 1
          %s136 = smul.addr %s135, 256
          %s137 = scalar_lea.vmem [#allocation2], %s136
          %s138 = smul.u32 2, %s25
          %s139 = smul.u32 16, %s24
          %141 = vsyncadd %s134, 0
          %s142 = smul.addr %s138, 32
          %s143 = sadd.s32 %s139, %s142
          %s144 = smul.addr %s143, 8
          %s145 = scalar_lea.hbm %s0, %s144
          %s147 = sshll.u32 1, 14
          %s148 = sxor.u32 4294967295, %s147
          %s150 = sld [smem:[#allocation0]]
          %s151 = sadd.s32 2, %s150
          %s153 = sshll.u32 7, 26
          %s154 = sxor.u32 4294967295, %s153
          %s155 = sand.u32 0, %s154
          %s156 = sshll.u32 %s151, 26
          %s157 = sor.u32 %s155, %s156
          %s158 = sshll.u32 %s145, 4
          %s159 = int_to_ptr.hbm [resolvable:$true] %s158
          %s160 = sshll.u32 %s137, 4
          %s161 = int_to_ptr.vmem [resolvable:$true] %s160
          %167 = sst [smem:[#allocation9]] 4096
          %s168 = scalar_lea.smem [#allocation9], 1
          %169 = sst [smem:[%s168]] 2048
          %s170 = scalar_lea.smem [#allocation9], 2
          %171 = sst [smem:[%s170]] 16
          %s172 = scalar_lea.smem [#allocation9], 3
          %173 = sst [smem:[%s172]] 128
          %s174 = scalar_lea.smem [#allocation9], 4
          %175 = sst [smem:[%s174]] 128
          %s176 = scalar_lea.smem [#allocation9], 5
          %177 = sst [smem:[%s176]] 8
          %179 = dma.general %s159, 4096, %s161, %s134, [#allocation8], [#allocation9], %s157, 0
        $region20: #{tpu_custom_call.1} parent=15 // pred_fallthru
          _
        // Predicated region
        $region21: #{tpu_custom_call.1} parent=15 // pred_check
          %p180 = pneg %p77
        $region22: #{tpu_custom_call.1} parent=15 // pred_check_branch
          %182 = sbr.rel (%p180) target = $region24
        $region23: #{tpu_custom_call.1} parent=15 // pred_region
          %s183 = sand.u32 %s67, 1
          %s184 = scalar_lea.sflag [#allocation6], %s183
          %s185 = sand.u32 %s67, 1
          %s186 = smul.addr %s185, 128
          %s187 = scalar_lea.vmem [#allocation5], %s186
          %s188 = smul.u32 16, %s24
          %190 = vsyncadd %s184, 0
          %s191 = smul.addr %s188, 8
          %s192 = scalar_lea.hbm %s1, %s191
          %s193 = sshll.u32 %s192, 4
          %s194 = int_to_ptr.hbm [resolvable:$true] %s193
          %s195 = sshll.u32 %s187, 4
          %s196 = int_to_ptr.vmem [resolvable:$true] %s195
          %201 = dma.hbm_to_vmem [thread:$0]  %s194, 2048, %s196, %s184, 128, 128, 8
        $region24: #{tpu_custom_call.1} parent=15 // pred_fallthru
          _
      $region16: #{tpu_custom_call.1} parent=5 // pred_fallthru
        _
      %p202 = scmp.le.s32.totalorder 1, %s17
      %p203 = scmp.lt.s32.totalorder %s17, 3
      %p204 = pnand %p202, %p203
      %p205 = pneg %p204
      // Predicated region
      $region25: #{tpu_custom_call.1} parent=5 // pred_check
        _
      $region26: #{tpu_custom_call.1} parent=5 // pred_check_branch
        %207 = sbr.rel (%p204) target = $region28
      $region27: #{tpu_custom_call.1} parent=5 // pred_region
        %s208 = ssub.s32 %s17, 1
        %s209 = sand.u32 %s44, 1
        %s210 = scalar_lea.sflag [#allocation3], %s209
        %s211 = sand.u32 %s44, 1
        %s212 = smul.addr %s211, 256
        %s213 = scalar_lea.vmem [#allocation2], %s212
        // Predicated region
        $region29: #{tpu_custom_call.1} parent=27 // pred_check
          %p214 = pneg %p57
        $region30: #{tpu_custom_call.1} parent=27 // pred_check_branch
          %216 = sbr.rel (%p214) target = $region32
        $region31: #{tpu_custom_call.1} parent=27 // pred_region
          %218 = dma.done %s210, 4096
        $region32: #{tpu_custom_call.1} parent=27 // pred_fallthru
          _
        %s219 = sand.u32 %s70, 1
        %s220 = scalar_lea.sflag [#allocation6], %s219
        %s221 = sand.u32 %s70, 1
        %s222 = smul.addr %s221, 128
        %s223 = scalar_lea.vmem [#allocation5], %s222
        // Predicated region
        $region33: #{tpu_custom_call.1} parent=27 // pred_check
          %p224 = pneg %p83
        $region34: #{tpu_custom_call.1} parent=27 // pred_check_branch
          %226 = sbr.rel (%p224) target = $region36
        $region35: #{tpu_custom_call.1} parent=27 // pred_region
          %228 = dma.done %s220, 2048
        $region36: #{tpu_custom_call.1} parent=27 // pred_fallthru
          _
        %s229 = sand.u32 %s44, 1
        %s230 = scalar_lea.sflag [#allocation3], %s229
        %s231 = sand.u32 %s44, 1
        %s232 = smul.addr %s231, 256
        %s233 = scalar_lea.vmem [#allocation2], %s232
        %p234 = pneg %p57
        %p235 = pneg %p54
        %s236 = sand.u32 %s70, 1
        %s237 = scalar_lea.sflag [#allocation6], %s236
        %s238 = sand.u32 %s70, 1
        %s239 = smul.addr %s238, 128
        %s240 = scalar_lea.vmem [#allocation5], %s239
        %p241 = pneg %p83
        %p242 = pneg %p80
        %p243 = pneg %p111
        %p244 = pneg %p108
        %s245 = sand.u32 %s98, 1
        %s246 = scalar_lea.sflag [#allocation4], %s245
        %s247 = sand.u32 %s98, 1
        %s248 = smul.addr %s247, 256
        %s249 = scalar_lea.vmem [#allocation7], %s248
        %s250 = smul.u32 2, %s27
        %s251 = smul.u32 16, %s26
        %s252 = smul.u32 16, %s26
        %s253 = smul.u32 2, %s27
        %s254 = smul.u32 16, %s26
        %v255 = vld [vmem:[%s213] sm:$0xff]
        %v256 = vld [vmem:[%s213 + $0x8] sm:$0xff]
        %v257 = vld [vmem:[%s213 + $0x10] sm:$0xff]
        %v258 = vld [vmem:[%s213 + $0x18] sm:$0xff]
        %v259 = vld [vmem:[%s213 + $0x20] sm:$0xff]
        %v260 = vld [vmem:[%s213 + $0x28] sm:$0xff]
        %v261 = vld [vmem:[%s213 + $0x30] sm:$0xff]
        %v262 = vld [vmem:[%s213 + $0x38] sm:$0xff]
        %v263 = vld [vmem:[%s213 + $0x40] sm:$0xff]
        %v264 = vld [vmem:[%s213 + $0x48] sm:$0xff]
        %v265 = vld [vmem:[%s213 + $0x50] sm:$0xff]
        %v266 = vld [vmem:[%s213 + $0x58] sm:$0xff]
        %v267 = vld [vmem:[%s213 + $0x60] sm:$0xff]
        %v268 = vld [vmem:[%s213 + $0x68] sm:$0xff]
        %v269 = vld [vmem:[%s213 + $0x70] sm:$0xff]
        %v270 = vld [vmem:[%s213 + $0x78] sm:$0xff]
        %v271 = vld [vmem:[%s213 + $0x80] sm:$0xff]
        %v272 = vld [vmem:[%s213 + $0x88] sm:$0xff]
        %v273 = vld [vmem:[%s213 + $0x90] sm:$0xff]
        %v274 = vld [vmem:[%s213 + $0x98] sm:$0xff]
        %v275 = vld [vmem:[%s213 + $0xa0] sm:$0xff]
        %v276 = vld [vmem:[%s213 + $0xa8] sm:$0xff]
        %v277 = vld [vmem:[%s213 + $0xb0] sm:$0xff]
        %v278 = vld [vmem:[%s213 + $0xb8] sm:$0xff]
        %v279 = vld [vmem:[%s213 + $0xc0] sm:$0xff]
        %v280 = vld [vmem:[%s213 + $0xc8] sm:$0xff]
        %v281 = vld [vmem:[%s213 + $0xd0] sm:$0xff]
        %v282 = vld [vmem:[%s213 + $0xd8] sm:$0xff]
        %v283 = vld [vmem:[%s213 + $0xe0] sm:$0xff]
        %v284 = vld [vmem:[%s213 + $0xe8] sm:$0xff]
        %v285 = vld [vmem:[%s213 + $0xf0] sm:$0xff]
        %v286 = vld [vmem:[%s213 + $0xf8] sm:$0xff]
        %v287 = vld [vmem:[%s223] sm:$0xff]
        %v288 = vld [vmem:[%s223 + $0x8] sm:$0xff]
        %v289 = vld [vmem:[%s223 + $0x10] sm:$0xff]
        %v290 = vld [vmem:[%s223 + $0x18] sm:$0xff]
        %v291 = vld [vmem:[%s223 + $0x20] sm:$0xff]
        %v292 = vld [vmem:[%s223 + $0x28] sm:$0xff]
        %v293 = vld [vmem:[%s223 + $0x30] sm:$0xff]
        %v294 = vld [vmem:[%s223 + $0x38] sm:$0xff]
        %v295 = vld [vmem:[%s223 + $0x40] sm:$0xff]
        %v296 = vld [vmem:[%s223 + $0x48] sm:$0xff]
        %v297 = vld [vmem:[%s223 + $0x50] sm:$0xff]
        %v298 = vld [vmem:[%s223 + $0x58] sm:$0xff]
        %v299 = vld [vmem:[%s223 + $0x60] sm:$0xff]
        %v300 = vld [vmem:[%s223 + $0x68] sm:$0xff]
        %v301 = vld [vmem:[%s223 + $0x70] sm:$0xff]
        %v302 = vld [vmem:[%s223 + $0x78] sm:$0xff]
        %v303 = vadd.f32 %v255, %v287
        %v304 = vadd.f32 %v256, %v288
        %v305 = vadd.f32 %v257, %v289
        %v306 = vadd.f32 %v258, %v290
        %v307 = vadd.f32 %v259, %v291
        %v308 = vadd.f32 %v260, %v292
        %v309 = vadd.f32 %v261, %v293
        %v310 = vadd.f32 %v262, %v294
        %v311 = vadd.f32 %v263, %v295
        %v312 = vadd.f32 %v264, %v296
        %v313 = vadd.f32 %v265, %v297
        %v314 = vadd.f32 %v266, %v298
        %v315 = vadd.f32 %v267, %v299
        %v316 = vadd.f32 %v268, %v300
        %v317 = vadd.f32 %v269, %v301
        %v318 = vadd.f32 %v270, %v302
        %v319 = vadd.f32 %v271, %v287
        %v320 = vadd.f32 %v272, %v288
        %v321 = vadd.f32 %v273, %v289
        %v322 = vadd.f32 %v274, %v290
        %v323 = vadd.f32 %v275, %v291
        %v324 = vadd.f32 %v276, %v292
        %v325 = vadd.f32 %v277, %v293
        %v326 = vadd.f32 %v278, %v294
        %v327 = vadd.f32 %v279, %v295
        %v328 = vadd.f32 %v280, %v296
        %v329 = vadd.f32 %v281, %v297
        %v330 = vadd.f32 %v282, %v298
        %v331 = vadd.f32 %v283, %v299
        %v332 = vadd.f32 %v284, %v300
        %v333 = vadd.f32 %v285, %v301
        %v334 = vadd.f32 %v286, %v302
        %335 = vst [vmem:[%s249] sm:$0xff] %v303
        %336 = vst [vmem:[%s249 + $0x8] sm:$0xff] %v304
        %337 = vst [vmem:[%s249 + $0x10] sm:$0xff] %v305
        %338 = vst [vmem:[%s249 + $0x18] sm:$0xff] %v306
        %339 = vst [vmem:[%s249 + $0x20] sm:$0xff] %v307
        %340 = vst [vmem:[%s249 + $0x28] sm:$0xff] %v308
        %341 = vst [vmem:[%s249 + $0x30] sm:$0xff] %v309
        %342 = vst [vmem:[%s249 + $0x38] sm:$0xff] %v310
        %343 = vst [vmem:[%s249 + $0x40] sm:$0xff] %v311
        %344 = vst [vmem:[%s249 + $0x48] sm:$0xff] %v312
        %345 = vst [vmem:[%s249 + $0x50] sm:$0xff] %v313
        %346 = vst [vmem:[%s249 + $0x58] sm:$0xff] %v314
        %347 = vst [vmem:[%s249 + $0x60] sm:$0xff] %v315
        %348 = vst [vmem:[%s249 + $0x68] sm:$0xff] %v316
        %349 = vst [vmem:[%s249 + $0x70] sm:$0xff] %v317
        %350 = vst [vmem:[%s249 + $0x78] sm:$0xff] %v318
        %351 = vst [vmem:[%s249 + $0x80] sm:$0xff] %v319
        %352 = vst [vmem:[%s249 + $0x88] sm:$0xff] %v320
        %353 = vst [vmem:[%s249 + $0x90] sm:$0xff] %v321
        %354 = vst [vmem:[%s249 + $0x98] sm:$0xff] %v322
        %355 = vst [vmem:[%s249 + $0xa0] sm:$0xff] %v323
        %356 = vst [vmem:[%s249 + $0xa8] sm:$0xff] %v324
        %357 = vst [vmem:[%s249 + $0xb0] sm:$0xff] %v325
        %358 = vst [vmem:[%s249 + $0xb8] sm:$0xff] %v326
        %359 = vst [vmem:[%s249 + $0xc0] sm:$0xff] %v327
        %360 = vst [vmem:[%s249 + $0xc8] sm:$0xff] %v328
        %361 = vst [vmem:[%s249 + $0xd0] sm:$0xff] %v329
        %362 = vst [vmem:[%s249 + $0xd8] sm:$0xff] %v330
        %363 = vst [vmem:[%s249 + $0xe0] sm:$0xff] %v331
        %364 = vst [vmem:[%s249 + $0xe8] sm:$0xff] %v332
        %365 = vst [vmem:[%s249 + $0xf0] sm:$0xff] %v333
        %366 = vst [vmem:[%s249 + $0xf8] sm:$0xff] %v334
        %s367 = sand.u32 %s98, 1
        %s368 = scalar_lea.sflag [#allocation4], %s367
        %s369 = sand.u32 %s98, 1
        %s370 = smul.addr %s369, 256
        %s371 = scalar_lea.vmem [#allocation7], %s370
        // Predicated region
        $region37: #{tpu_custom_call.1} parent=27 // pred_check
          %p372 = pneg %p108
        $region38: #{tpu_custom_call.1} parent=27 // pred_check_branch
          %374 = sbr.rel (%p372) target = $region40
        $region39: #{tpu_custom_call.1} parent=27 // pred_region
          #allocation11 [shape = 'u32[6]{0}', space=smem, size = 0x18, scoped, tag = 'DMA stride descriptor']
          %s375 = smul.u32 2, %s27
          %s376 = smul.u32 16, %s26
          %378 = vsyncadd %s368, 0
          %s379 = smul.addr %s375, 32
          %s380 = sadd.s32 %s376, %s379
          %s381 = smul.addr %s380, 8
          %s382 = scalar_lea.hbm %s2, %s381
          %s384 = sshll.u32 1, 14
          %s385 = sxor.u32 4294967295, %s384
          %s388 = sshll.u32 7, 18
          %s389 = sxor.u32 4294967295, %s388
          %s390 = sand.u32 0, %s389
          %s392 = sor.u32 %s390, 0
          %s393 = sshll.u32 %s371, 4
          %s394 = int_to_ptr.vmem [resolvable:$true] %s393
          %s395 = sshll.u32 %s382, 4
          %s396 = int_to_ptr.hbm [resolvable:$true] %s395
          %402 = sst [smem:[#allocation11]] 2048
          %s403 = scalar_lea.smem [#allocation11], 1
          %404 = sst [smem:[%s403]] 4096
          %s405 = scalar_lea.smem [#allocation11], 2
          %406 = sst [smem:[%s405]] 16
          %s407 = scalar_lea.smem [#allocation11], 3
          %408 = sst [smem:[%s407]] 128
          %s409 = scalar_lea.smem [#allocation11], 4
          %410 = sst [smem:[%s409]] 128
          %s411 = scalar_lea.smem [#allocation11], 5
          %412 = sst [smem:[%s411]] 8
          %414 = dma.general %s394, 4096, %s396, %s368, [#allocation10], [#allocation11], %s392, 0
        $region40: #{tpu_custom_call.1} parent=27 // pred_fallthru
          _
      $region28: #{tpu_custom_call.1} parent=5 // pred_fallthru
        _
      %p415 = scmp.le.s32.totalorder 2, %s17
      // Predicated region
      $region41: #{tpu_custom_call.1} parent=5 // pred_check
        %p416 = pneg %p415
      $region42: #{tpu_custom_call.1} parent=5 // pred_check_branch
        %418 = sbr.rel (%p416) target = $region44
      $region43: #{tpu_custom_call.1} parent=5 // pred_region
        %s419 = ssub.s32 %s17, 2
        // Predicated region
        $region45: #{tpu_custom_call.1} parent=43 // pred_check
          %p420 = pneg %p114
        $region46: #{tpu_custom_call.1} parent=43 // pred_check_branch
          %422 = sbr.rel (%p420) target = $region48
        $region47: #{tpu_custom_call.1} parent=43 // pred_region
          %s423 = sand.u32 %s99, 1
          %s424 = scalar_lea.sflag [#allocation4], %s423
          %s425 = sand.u32 %s99, 1
          %s426 = smul.addr %s425, 256
          %s427 = scalar_lea.vmem [#allocation7], %s426
          %429 = dma.done %s424, 4096
        $region48: #{tpu_custom_call.1} parent=43 // pred_fallthru
          _
      $region44: #{tpu_custom_call.1} parent=5 // pred_fallthru
        _
    $region6: #{tpu_custom_call.1} parent=1 // loop_footer
      %s21 = sadd.s32 1, %s17
    $region7: #{tpu_custom_call.1} parent=1 // loop_footer_branch
      %16 = sbr.rel target = $region3
    $region8: #{tpu_custom_call.1} parent=1 // loop_exit
      _
    %430 = vsyncpa [#allocation3], 1
    %s431 = scalar_lea.sflag [#allocation3], 1
    %432 = vsyncpa %s431, 1
    %433 = vsyncpa [#allocation6], 1
    %s434 = scalar_lea.sflag [#allocation6], 1
    %435 = vsyncpa %s434, 1
    %436 = vsyncpa [#allocation4], 1
    %s437 = scalar_lea.sflag [#allocation4], 1
    %438 = vsyncpa %s437, 1

</llo_original>
